<compile_context>
chip_gen: v7x
topology: tpu7x:2x2x1
jax: 0.10.0
libtpu: 0.0.40
codegen_flags: <defaults>
</compile_context>

<pallas_src>
import jax
import jax.numpy as jnp
from jax.experimental import pallas as pl
from jax.experimental.pallas import tpu as pltpu

IMG_SIZE = 16
IMG_FEAT = IMG_SIZE * IMG_SIZE   # 256
LATENT_DIM = 8
H1 = 8 ** 2                      # 64
H2 = 4 ** 2                      # 16


def _vae_mlp_kernel(x_ref, eps_ref,
                    ew0_ref, eb0_ref, ew1_ref, eb1_ref, ew2_ref, eb2_ref,
                    dw0_ref, db0_ref, dw1_ref, db1_ref, dw2_ref, db2_ref,
                    enc_ref, recons_ref):
    x = x_ref[...]                                            # (tb, img^2) f32

    # ---- encoder MLP: bf16 MXU operands, f32 accumulation, f32 elementwise --
    h = jnp.dot(x.astype(jnp.bfloat16), ew0_ref[...],
                preferred_element_type=jnp.float32) + eb0_ref[...]
    h = jnp.maximum(h, 0.0)                                   # ReLU (VPU, f32)
    h = jnp.dot(h.astype(jnp.bfloat16), ew1_ref[...],
                preferred_element_type=jnp.float32) + eb1_ref[...]
    h = jnp.maximum(h, 0.0)
    enc = jnp.dot(h.astype(jnp.bfloat16), ew2_ref[...],
                  preferred_element_type=jnp.float32) + eb2_ref[...]

    # One store of the full encoder head; mu/log_var split happens in the
    # wrapper, the reparam slices below stay in vregs (no extra stores).
    enc_ref[...] = enc                                        # (tb, 2*latent)

    mu = enc[:, :LATENT_DIM]
    logvar = enc[:, LATENT_DIM:]
    std = jnp.exp(0.5 * logvar)                               # EUP, f32
    z = eps_ref[...] * std + mu                               # (tb, latent)

    # ---- decoder MLP ----
    g = jnp.dot(z.astype(jnp.bfloat16), dw0_ref[...],
                preferred_element_type=jnp.float32) + db0_ref[...]
    g = jnp.maximum(g, 0.0)
    g = jnp.dot(g.astype(jnp.bfloat16), dw1_ref[...],
                preferred_element_type=jnp.float32) + db1_ref[...]
    g = jnp.maximum(g, 0.0)
    out = jnp.dot(g.astype(jnp.bfloat16), dw2_ref[...],
                  preferred_element_type=jnp.float32) + db2_ref[...]
    # sigmoid in f32, then cast once at the store (bf16 writeback by default).
    recons_ref[...] = jax.nn.sigmoid(out).astype(recons_ref.dtype)


def _choose_batch_tile(b, big_tile=512):
    """Biggest 8-row-aligned tile that keeps >= 2 grid steps (v7x megacore).

    Returns (tile_rows, pad_rows). Small batches use a single full-batch tile
    (block shape == array shape satisfies the (8,128) rule).
    """
    if b < 16:
        return b, 0
    bp8 = ((b + 7) // 8) * 8                      # sublane-align padded batch
    tb = min(big_tile, ((bp8 // 2 + 7) // 8) * 8)  # >= 2 grid steps
    bp = ((bp8 + tb - 1) // tb) * tb
    return tb, bp - b


def vae_forward(x_nchw, eps, params, *, batch_tile=512,
                recons_dtype=jnp.bfloat16):
    """x_nchw: (B, 1, img, img) f32; eps: (B, latent) f32.
    Returns (mu f32, log_var f32, recons NCHW in `recons_dtype`)."""
    b = x_nchw.shape[0]
    x_flat = x_nchw.reshape(b, IMG_FEAT)

    tb, pad = _choose_batch_tile(b, batch_tile)
    if pad:
        # Only triggers when the batch isn't tile-aligned; padded rows run
        # through the (benign) math and are sliced off below.
        x_flat = jnp.pad(x_flat, ((0, pad), (0, 0)))
        eps = jnp.pad(eps, ((0, pad), (0, 0)))
    bp = b + pad
    nb = bp // tb

    row_map = lambda i: (i, 0)       # batch-tiled arrays
    const_map = lambda i: (0, 0)     # weights/biases: VMEM-resident all steps
    param_specs = [pl.BlockSpec(p.shape, const_map) for p in params]

    enc, recons_flat = pl.pallas_call(
        _vae_mlp_kernel,
        out_shape=(
            jax.ShapeDtypeStruct((bp, 2 * LATENT_DIM), jnp.float32),
            jax.ShapeDtypeStruct((bp, IMG_FEAT), recons_dtype),
        ),
        grid=(nb,),
        in_specs=[pl.BlockSpec((tb, IMG_FEAT), row_map),
                  pl.BlockSpec((tb, LATENT_DIM), row_map)] + param_specs,
        out_specs=(pl.BlockSpec((tb, 2 * LATENT_DIM), row_map),
                   pl.BlockSpec((tb, IMG_FEAT), row_map)),
        compiler_params=pltpu.CompilerParams(
            dimension_semantics=("parallel",)),   # v7x: shard batch across TCs
    )(x_flat, eps, *params)

    mu = enc[:b, :LATENT_DIM]
    log_var = enc[:b, LATENT_DIM:]
    recons = recons_flat[:b].reshape(b, 1, IMG_SIZE, IMG_SIZE)
    return mu, log_var, recons


def _init_linear(key, fan_in, fan_out):
    """Deterministic init; weights stored (in, out) bf16 so the kernel does
    x @ W on the native MXU path; biases stay f32."""
    kw, kb = jax.random.split(key)
    bound = 1.0 / jnp.sqrt(jnp.float32(fan_in))
    w = jax.random.uniform(kw, (fan_in, fan_out), jnp.float32, -bound, bound)
    b = jax.random.uniform(kb, (1, fan_out), jnp.float32, -bound, bound)
    return w.astype(jnp.bfloat16), b


def make_params(key):
    keys = jax.random.split(key, 6)
    ew0, eb0 = _init_linear(keys[0], IMG_FEAT, H1)
    ew1, eb1 = _init_linear(keys[1], H1, H2)
    ew2, eb2 = _init_linear(keys[2], H2, 2 * LATENT_DIM)
    dw0, db0 = _init_linear(keys[3], LATENT_DIM, H2)
    dw1, db1 = _init_linear(keys[4], H2, H1)
    dw2, db2 = _init_linear(keys[5], H1, IMG_FEAT)
    return (ew0, eb0, ew1, eb1, ew2, eb2, dw0, db0, dw1, db1, dw2, db2)


def _reference_forward(x_nchw, eps, params, recons_dtype=jnp.bfloat16):
    """Pure-JAX reference following the identical dtype path as the kernel."""
    (ew0, eb0, ew1, eb1, ew2, eb2, dw0, db0, dw1, db1, dw2, db2) = params
    bf = jnp.bfloat16
    x = x_nchw.reshape(x_nchw.shape[0], -1)
    h = jnp.maximum(jnp.dot(x.astype(bf), ew0,
                            preferred_element_type=jnp.float32) + eb0, 0.0)
    h = jnp.maximum(jnp.dot(h.astype(bf), ew1,
                            preferred_element_type=jnp.float32) + eb1, 0.0)
    enc = jnp.dot(h.astype(bf), ew2, preferred_element_type=jnp.float32) + eb2
    mu, logvar = enc[:, :LATENT_DIM], enc[:, LATENT_DIM:]
    z = eps * jnp.exp(0.5 * logvar) + mu
    g = jnp.maximum(jnp.dot(z.astype(bf), dw0,
                            preferred_element_type=jnp.float32) + db0, 0.0)
    g = jnp.maximum(jnp.dot(g.astype(bf), dw1,
                            preferred_element_type=jnp.float32) + db1, 0.0)
    rec = jax.nn.sigmoid(jnp.dot(g.astype(bf), dw2,
                                 preferred_element_type=jnp.float32) + db2)
    rec = rec.astype(recons_dtype)
    return mu, logvar, rec.reshape(-1, 1, IMG_SIZE, IMG_SIZE)


def _check(x, eps, params, fwd):
    mu, log_var, recons = jax.block_until_ready(fwd(x, eps, params))
    mu_r, lv_r, rec_r = _reference_forward(x, eps, params)
    b = x.shape[0]
    assert mu.shape == (b, LATENT_DIM)
    assert log_var.shape == (b, LATENT_DIM)
    assert recons.shape == (b, 1, IMG_SIZE, IMG_SIZE)
    assert recons.dtype == jnp.bfloat16
    assert jnp.allclose(mu, mu_r, atol=2e-3, rtol=2e-3)
    assert jnp.allclose(log_var, lv_r, atol=2e-3, rtol=2e-3)
    assert jnp.allclose(recons.astype(jnp.float32), rec_r.astype(jnp.float32),
                        atol=1e-2, rtol=1e-2)


if __name__ == "__main__":
    root = jax.random.PRNGKey(0)
    k_p, *kx = jax.random.split(root, 7)
    params = make_params(k_p)

    fwd = jax.jit(vae_forward)

    # --- small-shape check (batch=2): single grid step, full-batch tile ---
    x = jax.random.uniform(kx[0], (2, 1, IMG_SIZE, IMG_SIZE), jnp.float32)
    eps = jax.random.normal(kx[1], (2, LATENT_DIM), jnp.float32)
    _check(x, eps, params, fwd)

    # --- batch=256: 2 tiles of 128, weights VMEM-resident, "parallel" grid ---
    xb = jax.random.uniform(kx[2], (256, 1, IMG_SIZE, IMG_SIZE), jnp.float32)
    epsb = jax.random.normal(kx[3], (256, LATENT_DIM), jnp.float32)
    _check(xb, epsb, params, fwd)

    # --- batch=1000: non-aligned batch -> padded to 2 tiles of 504 rows ---
    xc = jax.random.uniform(kx[4], (1000, 1, IMG_SIZE, IMG_SIZE), jnp.float32)
    epsc = jax.random.normal(kx[5], (1000, LATENT_DIM), jnp.float32)
    _check(xc, epsc, params, fwd)

    print("KERNEL_OK")
</pallas_src>

<mosaic_0001>
module attributes {stable_mosaic.version = 11 : i64} {
  func.func @_vae_mlp_kernel(%arg0: i32, %arg1: memref<2x256xf32, #tpu.memory_space<vmem>>, %arg2: memref<2x8xf32, #tpu.memory_space<vmem>>, %arg3: memref<256x64xbf16, #tpu.memory_space<vmem>>, %arg4: memref<1x64xf32, #tpu.memory_space<vmem>>, %arg5: memref<64x16xbf16, #tpu.memory_space<vmem>>, %arg6: memref<1x16xf32, #tpu.memory_space<vmem>>, %arg7: memref<16x16xbf16, #tpu.memory_space<vmem>>, %arg8: memref<1x16xf32, #tpu.memory_space<vmem>>, %arg9: memref<8x16xbf16, #tpu.memory_space<vmem>>, %arg10: memref<1x16xf32, #tpu.memory_space<vmem>>, %arg11: memref<16x64xbf16, #tpu.memory_space<vmem>>, %arg12: memref<1x64xf32, #tpu.memory_space<vmem>>, %arg13: memref<64x256xbf16, #tpu.memory_space<vmem>>, %arg14: memref<1x256xf32, #tpu.memory_space<vmem>>, %arg15: memref<2x16xf32, #tpu.memory_space<vmem>>, %arg16: memref<2x256xbf16, #tpu.memory_space<vmem>>) attributes {dimension_semantics = [#tpu.dimension_semantics<parallel>], iteration_bounds = array<i64: 1>, scalar_prefetch = 0 : i64, scratch_operands = 0 : i64, tpu.core_type = #tpu.core_type<tc>, window_params = [{transform_indices = @transform_0, window_bounds = array<i64: 2, 256>}, {transform_indices = @transform_1, window_bounds = array<i64: 2, 8>}, {pipeline_mode = #tpu.pipeline_mode<synchronous>, transform_indices = @transform_2, window_bounds = array<i64: 256, 64>}, {pipeline_mode = #tpu.pipeline_mode<synchronous>, transform_indices = @transform_3, window_bounds = array<i64: 1, 64>}, {pipeline_mode = #tpu.pipeline_mode<synchronous>, transform_indices = @transform_4, window_bounds = array<i64: 64, 16>}, {pipeline_mode = #tpu.pipeline_mode<synchronous>, transform_indices = @transform_5, window_bounds = array<i64: 1, 16>}, {pipeline_mode = #tpu.pipeline_mode<synchronous>, transform_indices = @transform_6, window_bounds = array<i64: 16, 16>}, {pipeline_mode = #tpu.pipeline_mode<synchronous>, transform_indices = @transform_7, window_bounds = array<i64: 1, 16>}, {pipeline_mode = #tpu.pipeline_mode<synchronous>, transform_indices = @transform_8, window_bounds = array<i64: 8, 16>}, {pipeline_mode = #tpu.pipeline_mode<synchronous>, transform_indices = @transform_9, window_bounds = array<i64: 1, 16>}, {pipeline_mode = #tpu.pipeline_mode<synchronous>, transform_indices = @transform_10, window_bounds = array<i64: 16, 64>}, {pipeline_mode = #tpu.pipeline_mode<synchronous>, transform_indices = @transform_11, window_bounds = array<i64: 1, 64>}, {pipeline_mode = #tpu.pipeline_mode<synchronous>, transform_indices = @transform_12, window_bounds = array<i64: 64, 256>}, {pipeline_mode = #tpu.pipeline_mode<synchronous>, transform_indices = @transform_13, window_bounds = array<i64: 1, 256>}, {transform_indices = @transform_14, window_bounds = array<i64: 2, 16>}, {transform_indices = @transform_15, window_bounds = array<i64: 2, 256>}]} {
    %c0 = arith.constant 0 : index
    %c0_0 = arith.constant 0 : index
    %0 = vector.load %arg1[%c0, %c0_0] : memref<2x256xf32, #tpu.memory_space<vmem>>, vector<2x256xf32>
    %1 = arith.truncf %0 : vector<2x256xf32> to vector<2x256xbf16>
    %c0_1 = arith.constant 0 : index
    %c0_2 = arith.constant 0 : index
    %2 = vector.load %arg3[%c0_1, %c0_2] : memref<256x64xbf16, #tpu.memory_space<vmem>>, vector<256x64xbf16>
    %cst = arith.constant dense<0.000000e+00> : vector<2x64xf32>
    %3 = tpu.matmul %1, %2, %cst {dimension_numbers = #tpu.dot_dimension_numbers<[1], [0], [0], [1], [0, 0, 1, 1], [], []>} : vector<2x256xbf16>, vector<256x64xbf16>, vector<2x64xf32> -> vector<2x64xf32>
    %c0_3 = arith.constant 0 : index
    %c0_4 = arith.constant 0 : index
    %4 = vector.load %arg4[%c0_3, %c0_4] : memref<1x64xf32, #tpu.memory_space<vmem>>, vector<1x64xf32>
    %5 = vector.broadcast %4 : vector<1x64xf32> to vector<2x64xf32>
    %6 = arith.addf %3, %5 : vector<2x64xf32>
    %cst_5 = arith.constant 0.000000e+00 : f32
    %7 = vector.broadcast %cst_5 : f32 to vector<2x64xf32>
    %8 = arith.maximumf %6, %7 : vector<2x64xf32>
    %9 = arith.truncf %8 : vector<2x64xf32> to vector<2x64xbf16>
    %c0_6 = arith.constant 0 : index
    %c0_7 = arith.constant 0 : index
    %10 = vector.load %arg5[%c0_6, %c0_7] : memref<64x16xbf16, #tpu.memory_space<vmem>>, vector<64x16xbf16>
    %cst_8 = arith.constant dense<0.000000e+00> : vector<2x16xf32>
    %11 = tpu.matmul %9, %10, %cst_8 {dimension_numbers = #tpu.dot_dimension_numbers<[1], [0], [0], [1], [0, 0, 1, 1], [], []>} : vector<2x64xbf16>, vector<64x16xbf16>, vector<2x16xf32> -> vector<2x16xf32>
    %c0_9 = arith.constant 0 : index
    %c0_10 = arith.constant 0 : index
    %12 = vector.load %arg6[%c0_9, %c0_10] : memref<1x16xf32, #tpu.memory_space<vmem>>, vector<1x16xf32>
    %13 = vector.broadcast %12 : vector<1x16xf32> to vector<2x16xf32>
    %14 = arith.addf %11, %13 : vector<2x16xf32>
    %cst_11 = arith.constant 0.000000e+00 : f32
    %15 = vector.broadcast %cst_11 : f32 to vector<2x16xf32>
    %16 = arith.maximumf %14, %15 : vector<2x16xf32>
    %17 = arith.truncf %16 : vector<2x16xf32> to vector<2x16xbf16>
    %c0_12 = arith.constant 0 : index
    %c0_13 = arith.constant 0 : index
    %18 = vector.load %arg7[%c0_12, %c0_13] : memref<16x16xbf16, #tpu.memory_space<vmem>>, vector<16x16xbf16>
    %cst_14 = arith.constant dense<0.000000e+00> : vector<2x16xf32>
    %19 = tpu.matmul %17, %18, %cst_14 {dimension_numbers = #tpu.dot_dimension_numbers<[1], [0], [0], [1], [0, 0, 1, 1], [], []>} : vector<2x16xbf16>, vector<16x16xbf16>, vector<2x16xf32> -> vector<2x16xf32>
    %c0_15 = arith.constant 0 : index
    %c0_16 = arith.constant 0 : index
    %20 = vector.load %arg8[%c0_15, %c0_16] : memref<1x16xf32, #tpu.memory_space<vmem>>, vector<1x16xf32>
    %21 = vector.broadcast %20 : vector<1x16xf32> to vector<2x16xf32>
    %22 = arith.addf %19, %21 : vector<2x16xf32>
    %c0_17 = arith.constant 0 : index
    %c0_18 = arith.constant 0 : index
    %23 = vector.load %arg15[%c0_17, %c0_18] : memref<2x16xf32, #tpu.memory_space<vmem>>, vector<2x16xf32>
    tpu.vector_store %arg15[%c0_17, %c0_18], %22 {strides = array<i32>} : memref<2x16xf32, #tpu.memory_space<vmem>>, vector<2x16xf32>,
    %24 = vector.extract_strided_slice %22 {offsets = [0, 0], sizes = [2, 8], strides = [1, 1]} : vector<2x16xf32> to vector<2x8xf32>
    %25 = vector.extract_strided_slice %22 {offsets = [0, 8], sizes = [2, 8], strides = [1, 1]} : vector<2x16xf32> to vector<2x8xf32>
    %cst_19 = arith.constant 5.000000e-01 : f32
    %26 = vector.broadcast %cst_19 : f32 to vector<2x8xf32>
    %27 = arith.mulf %26, %25 : vector<2x8xf32>
    %28 = math.exp %27 : vector<2x8xf32>
    %c0_20 = arith.constant 0 : index
    %c0_21 = arith.constant 0 : index
    %29 = vector.load %arg2[%c0_20, %c0_21] : memref<2x8xf32, #tpu.memory_space<vmem>>, vector<2x8xf32>
    %30 = arith.mulf %29, %28 : vector<2x8xf32>
    %31 = arith.addf %30, %24 : vector<2x8xf32>
    %32 = arith.truncf %31 : vector<2x8xf32> to vector<2x8xbf16>
    %c0_22 = arith.constant 0 : index
    %c0_23 = arith.constant 0 : index
    %33 = vector.load %arg9[%c0_22, %c0_23] : memref<8x16xbf16, #tpu.memory_space<vmem>>, vector<8x16xbf16>
    %cst_24 = arith.constant dense<0.000000e+00> : vector<2x16xf32>
    %34 = tpu.matmul %32, %33, %cst_24 {dimension_numbers = #tpu.dot_dimension_numbers<[1], [0], [0], [1], [0, 0, 1, 1], [], []>} : vector<2x8xbf16>, vector<8x16xbf16>, vector<2x16xf32> -> vector<2x16xf32>
    %c0_25 = arith.constant 0 : index
    %c0_26 = arith.constant 0 : index
    %35 = vector.load %arg10[%c0_25, %c0_26] : memref<1x16xf32, #tpu.memory_space<vmem>>, vector<1x16xf32>
    %36 = vector.broadcast %35 : vector<1x16xf32> to vector<2x16xf32>
    %37 = arith.addf %34, %36 : vector<2x16xf32>
    %cst_27 = arith.constant 0.000000e+00 : f32
    %38 = vector.broadcast %cst_27 : f32 to vector<2x16xf32>
    %39 = arith.maximumf %37, %38 : vector<2x16xf32>
    %40 = arith.truncf %39 : vector<2x16xf32> to vector<2x16xbf16>
    %c0_28 = arith.constant 0 : index
    %c0_29 = arith.constant 0 : index
    %41 = vector.load %arg11[%c0_28, %c0_29] : memref<16x64xbf16, #tpu.memory_space<vmem>>, vector<16x64xbf16>
    %cst_30 = arith.constant dense<0.000000e+00> : vector<2x64xf32>
    %42 = tpu.matmul %40, %41, %cst_30 {dimension_numbers = #tpu.dot_dimension_numbers<[1], [0], [0], [1], [0, 0, 1, 1], [], []>} : vector<2x16xbf16>, vector<16x64xbf16>, vector<2x64xf32> -> vector<2x64xf32>
    %c0_31 = arith.constant 0 : index
    %c0_32 = arith.constant 0 : index
    %43 = vector.load %arg12[%c0_31, %c0_32] : memref<1x64xf32, #tpu.memory_space<vmem>>, vector<1x64xf32>
    %44 = vector.broadcast %43 : vector<1x64xf32> to vector<2x64xf32>
    %45 = arith.addf %42, %44 : vector<2x64xf32>
    %cst_33 = arith.constant 0.000000e+00 : f32
    %46 = vector.broadcast %cst_33 : f32 to vector<2x64xf32>
    %47 = arith.maximumf %45, %46 : vector<2x64xf32>
    %48 = arith.truncf %47 : vector<2x64xf32> to vector<2x64xbf16>
    %c0_34 = arith.constant 0 : index
    %c0_35 = arith.constant 0 : index
    %49 = vector.load %arg13[%c0_34, %c0_35] : memref<64x256xbf16, #tpu.memory_space<vmem>>, vector<64x256xbf16>
    %cst_36 = arith.constant dense<0.000000e+00> : vector<2x256xf32>
    %50 = tpu.matmul %48, %49, %cst_36 {dimension_numbers = #tpu.dot_dimension_numbers<[1], [0], [0], [1], [0, 0, 1, 1], [], []>} : vector<2x64xbf16>, vector<64x256xbf16>, vector<2x256xf32> -> vector<2x256xf32>
    %c0_37 = arith.constant 0 : index
    %c0_38 = arith.constant 0 : index
    %51 = vector.load %arg14[%c0_37, %c0_38] : memref<1x256xf32, #tpu.memory_space<vmem>>, vector<1x256xf32>
    %52 = vector.broadcast %51 : vector<1x256xf32> to vector<2x256xf32>
    %53 = arith.addf %50, %52 : vector<2x256xf32>
    %54 = arith.negf %53 : vector<2x256xf32>
    %55 = math.exp %54 : vector<2x256xf32>
    %cst_39 = arith.constant 1.000000e+00 : f32
    %56 = vector.broadcast %cst_39 : f32 to vector<2x256xf32>
    %57 = arith.addf %56, %55 : vector<2x256xf32>
    %58 = arith.divf %56, %57 : vector<2x256xf32>
    %59 = arith.truncf %58 : vector<2x256xf32> to vector<2x256xbf16>
    %c0_40 = arith.constant 0 : index
    %c0_41 = arith.constant 0 : index
    %60 = vector.load %arg16[%c0_40, %c0_41] : memref<2x256xbf16, #tpu.memory_space<vmem>>, vector<2x256xbf16>
    tpu.vector_store %arg16[%c0_40, %c0_41], %59 {strides = array<i32>} : memref<2x256xbf16, #tpu.memory_space<vmem>>, vector<2x256xbf16>,
    return
  }
  func.func @transform_0(%arg0: i32) -> (i32, i32) {
    %c0_i32 = arith.constant 0 : i32
    %c0_i32_0 = arith.constant 0 : i32
    return %arg0, %c0_i32 : i32, i32
  }
  func.func @transform_1(%arg0: i32) -> (i32, i32) {
    %c0_i32 = arith.constant 0 : i32
    %c0_i32_0 = arith.constant 0 : i32
    return %arg0, %c0_i32 : i32, i32
  }
  func.func @transform_2(%arg0: i32) -> (i32, i32) {
    %c0_i32 = arith.constant 0 : i32
    %c0_i32_0 = arith.constant 0 : i32
    %c0_i32_1 = arith.constant 0 : i32
    return %c0_i32, %c0_i32_0 : i32, i32
  }
  func.func @transform_3(%arg0: i32) -> (i32, i32) {
    %c0_i32 = arith.constant 0 : i32
    %c0_i32_0 = arith.constant 0 : i32
    %c0_i32_1 = arith.constant 0 : i32
    return %c0_i32, %c0_i32_0 : i32, i32
  }
  func.func @transform_4(%arg0: i32) -> (i32, i32) {
    %c0_i32 = arith.constant 0 : i32
    %c0_i32_0 = arith.constant 0 : i32
    %c0_i32_1 = arith.constant 0 : i32
    return %c0_i32, %c0_i32_0 : i32, i32
  }
  func.func @transform_5(%arg0: i32) -> (i32, i32) {
    %c0_i32 = arith.constant 0 : i32
    %c0_i32_0 = arith.constant 0 : i32
    %c0_i32_1 = arith.constant 0 : i32
    return %c0_i32, %c0_i32_0 : i32, i32
  }
  func.func @transform_6(%arg0: i32) -> (i32, i32) {
    %c0_i32 = arith.constant 0 : i32
    %c0_i32_0 = arith.constant 0 : i32
    %c0_i32_1 = arith.constant 0 : i32
    return %c0_i32, %c0_i32_0 : i32, i32
  }
  func.func @transform_7(%arg0: i32) -> (i32, i32) {
    %c0_i32 = arith.constant 0 : i32
    %c0_i32_0 = arith.constant 0 : i32
    %c0_i32_1 = arith.constant 0 : i32
    return %c0_i32, %c0_i32_0 : i32, i32
  }
  func.func @transform_8(%arg0: i32) -> (i32, i32) {
    %c0_i32 = arith.constant 0 : i32
    %c0_i32_0 = arith.constant 0 : i32
    %c0_i32_1 = arith.constant 0 : i32
    return %c0_i32, %c0_i32_0 : i32, i32
  }
  func.func @transform_9(%arg0: i32) -> (i32, i32) {
    %c0_i32 = arith.constant 0 : i32
    %c0_i32_0 = arith.constant 0 : i32
    %c0_i32_1 = arith.constant 0 : i32
    return %c0_i32, %c0_i32_0 : i32, i32
  }
  func.func @transform_10(%arg0: i32) -> (i32, i32) {
    %c0_i32 = arith.constant 0 : i32
    %c0_i32_0 = arith.constant 0 : i32
    %c0_i32_1 = arith.constant 0 : i32
    return %c0_i32, %c0_i32_0 : i32, i32
  }
  func.func @transform_11(%arg0: i32) -> (i32, i32) {
    %c0_i32 = arith.constant 0 : i32
    %c0_i32_0 = arith.constant 0 : i32
    %c0_i32_1 = arith.constant 0 : i32
    return %c0_i32, %c0_i32_0 : i32, i32
  }
  func.func @transform_12(%arg0: i32) -> (i32, i32) {
    %c0_i32 = arith.constant 0 : i32
    %c0_i32_0 = arith.constant 0 : i32
    %c0_i32_1 = arith.constant 0 : i32
    return %c0_i32, %c0_i32_0 : i32, i32
  }
  func.func @transform_13(%arg0: i32) -> (i32, i32) {
    %c0_i32 = arith.constant 0 : i32
    %c0_i32_0 = arith.constant 0 : i32
    %c0_i32_1 = arith.constant 0 : i32
    return %c0_i32, %c0_i32_0 : i32, i32
  }
  func.func @transform_14(%arg0: i32) -> (i32, i32) {
    %c0_i32 = arith.constant 0 : i32
    %c0_i32_0 = arith.constant 0 : i32
    return %arg0, %c0_i32 : i32, i32
  }
  func.func @transform_15(%arg0: i32) -> (i32, i32) {
    %c0_i32 = arith.constant 0 : i32
    %c0_i32_0 = arith.constant 0 : i32
    return %arg0, %c0_i32 : i32, i32
  }
}

</mosaic_0001>

<llo_original>
// kernel: vae_forward.1
$region0: #{vae_forward.1}
  #allocation0 [shape = 'u32[]', space=smem, size = 0x4, offset = 0x4, fixed_abs, tag = 'smem constant byte address 0x4 - core index']
  #allocation1 [shape = 'u32[144,128]{1,0:T(1,128)}', space=vmem, size = 0x12000, scoped, tag = 'internal scratch']
  %s0 = inlined_call_operand.vmem [shape: f32[2,256], index: 0, kind: input, shape index: {}]
  %s1 = inlined_call_operand.vmem [shape: f32[2,8], index: 1, kind: input, shape index: {}]
  %s2 = inlined_call_operand.vmem [shape: bf16[256,64], index: 2, kind: input, shape index: {}]
  %s3 = inlined_call_operand.vmem [shape: f32[1,64], index: 3, kind: input, shape index: {}]
  %s4 = inlined_call_operand.vmem [shape: bf16[64,16], index: 4, kind: input, shape index: {}]
  %s5 = inlined_call_operand.vmem [shape: f32[1,16], index: 5, kind: input, shape index: {}]
  %s6 = inlined_call_operand.vmem [shape: bf16[16,16], index: 6, kind: input, shape index: {}]
  %s7 = inlined_call_operand.vmem [shape: f32[1,16], index: 7, kind: input, shape index: {}]
  %s8 = inlined_call_operand.vmem [shape: bf16[8,16], index: 8, kind: input, shape index: {}]
  %s9 = inlined_call_operand.vmem [shape: f32[1,16], index: 9, kind: input, shape index: {}]
  %s10 = inlined_call_operand.vmem [shape: bf16[16,64], index: 10, kind: input, shape index: {}]
  %s11 = inlined_call_operand.vmem [shape: f32[1,64], index: 11, kind: input, shape index: {}]
  %s12 = inlined_call_operand.vmem [shape: bf16[64,256], index: 12, kind: input, shape index: {}]
  %s13 = inlined_call_operand.vmem [shape: f32[1,256], index: 13, kind: input, shape index: {}]
  %s14 = inlined_call_operand.vmem [shape: f32[2,16], index: 14, kind: output, shape index: {0}]
  %s15 = inlined_call_operand.vmem [shape: bf16[2,256], index: 15, kind: output, shape index: {1}]
  %16 = xla_tuple %s14, %s15
  %s17 = sld [smem:[#allocation0]]
  $region74: #{vae_forward.1} parent=0
    _
  %s19 = ssub.s32 1, %s17
  %s20 = scalar_select 0, %s19, %s17
  // Predicated region
  $region2: #{vae_forward.1} parent=0 // pred_check
    _
  $region3: #{vae_forward.1} parent=0 // pred_check_branch
    %22 = sbr.rel (0) target = $region5
  $region4: #{vae_forward.1} parent=0 // pred_region
    _
  $region5: #{vae_forward.1} parent=0 // pred_fallthru
    _
  // Predicated region
  $region6: #{vae_forward.1} parent=0 // pred_check
    _
  $region7: #{vae_forward.1} parent=0 // pred_check_branch
    %24 = sbr.rel (0) target = $region9
  $region8: #{vae_forward.1} parent=0 // pred_region
    _
  $region9: #{vae_forward.1} parent=0 // pred_fallthru
    _
  // Predicated region
  $region10: #{vae_forward.1} parent=0 // pred_check
    _
  $region11: #{vae_forward.1} parent=0 // pred_check_branch
    %26 = sbr.rel (0) target = $region13
  $region12: #{vae_forward.1} parent=0 // pred_region
    _
  $region13: #{vae_forward.1} parent=0 // pred_fallthru
    _
  // Predicated region
  $region14: #{vae_forward.1} parent=0 // pred_check
    _
  $region15: #{vae_forward.1} parent=0 // pred_check_branch
    %28 = sbr.rel (0) target = $region17
  $region16: #{vae_forward.1} parent=0 // pred_region
    _
  $region17: #{vae_forward.1} parent=0 // pred_fallthru
    _
  // Predicated region
  $region18: #{vae_forward.1} parent=0 // pred_check
    _
  $region19: #{vae_forward.1} parent=0 // pred_check_branch
    %30 = sbr.rel (0) target = $region21
  $region20: #{vae_forward.1} parent=0 // pred_region
    _
  $region21: #{vae_forward.1} parent=0 // pred_fallthru
    _
  // Predicated region
  $region22: #{vae_forward.1} parent=0 // pred_check
    _
  $region23: #{vae_forward.1} parent=0 // pred_check_branch
    %32 = sbr.rel (0) target = $region25
  $region24: #{vae_forward.1} parent=0 // pred_region
    _
  $region25: #{vae_forward.1} parent=0 // pred_fallthru
    _
  // Predicated region
  $region26: #{vae_forward.1} parent=0 // pred_check
    _
  $region27: #{vae_forward.1} parent=0 // pred_check_branch
    %34 = sbr.rel (0) target = $region29
  $region28: #{vae_forward.1} parent=0 // pred_region
    _
  $region29: #{vae_forward.1} parent=0 // pred_fallthru
    _
  // Predicated region
  $region30: #{vae_forward.1} parent=0 // pred_check
    _
  $region31: #{vae_forward.1} parent=0 // pred_check_branch
    %36 = sbr.rel (0) target = $region33
  $region32: #{vae_forward.1} parent=0 // pred_region
    _
  $region33: #{vae_forward.1} parent=0 // pred_fallthru
    _
  // Predicated region
  $region34: #{vae_forward.1} parent=0 // pred_check
    _
  $region35: #{vae_forward.1} parent=0 // pred_check_branch
    %38 = sbr.rel (0) target = $region37
  $region36: #{vae_forward.1} parent=0 // pred_region
    _
  $region37: #{vae_forward.1} parent=0 // pred_fallthru
    _
  // Predicated region
  $region38: #{vae_forward.1} parent=0 // pred_check
    _
  $region39: #{vae_forward.1} parent=0 // pred_check_branch
    %40 = sbr.rel (0) target = $region41
  $region40: #{vae_forward.1} parent=0 // pred_region
    _
  $region41: #{vae_forward.1} parent=0 // pred_fallthru
    _
  // Predicated region
  $region42: #{vae_forward.1} parent=0 // pred_check
    _
  $region43: #{vae_forward.1} parent=0 // pred_check_branch
    %42 = sbr.rel (0) target = $region45
  $region44: #{vae_forward.1} parent=0 // pred_region
    _
  $region45: #{vae_forward.1} parent=0 // pred_fallthru
    _
  // Predicated region
  $region46: #{vae_forward.1} parent=0 // pred_check
    _
  $region47: #{vae_forward.1} parent=0 // pred_check_branch
    %44 = sbr.rel (0) target = $region49
  $region48: #{vae_forward.1} parent=0 // pred_region
    _
  $region49: #{vae_forward.1} parent=0 // pred_fallthru
    _
  // Predicated region
  $region50: #{vae_forward.1} parent=0 // pred_check
    _
  $region51: #{vae_forward.1} parent=0 // pred_check_branch
    %46 = sbr.rel (0) target = $region53
  $region52: #{vae_forward.1} parent=0 // pred_region
    _
  $region53: #{vae_forward.1} parent=0 // pred_fallthru
    _
  // Predicated region
  $region54: #{vae_forward.1} parent=0 // pred_check
    _
  $region55: #{vae_forward.1} parent=0 // pred_check_branch
    %48 = sbr.rel (0) target = $region57
  $region56: #{vae_forward.1} parent=0 // pred_region
    _
  $region57: #{vae_forward.1} parent=0 // pred_fallthru
    _
  %v50 = vld [vmem:[%s0] sm:$0xf]
  %v53 = vunpack.c.l.s4 1983009808
  %v54 = vunpack.c.0.s8 %v53
  %v55 = vlaneseq
  %v56 = vshrl.u32 %v55, 7
  %v57 = vsub.s32 %v54, %v56
  %v58 = vrot.slane %v50, %v57
  %v59 = vcombine.high %v58, %v58
  %v62 = vpack.c.bf16 %v58, %v58
  %v63 = vpack.c.bf16 %v59, %v59
  %v64 = vld [vmem:[%s2] sm:$0xf]
  %v65 = vld [vmem:[%s2 + $0x4] sm:$0xf]
  %v66 = vld [vmem:[%s2 + $0x8] sm:$0xf]
  %v67 = vld [vmem:[%s2 + $0xc] sm:$0xf]
  %v68 = vld [vmem:[%s2 + $0x10] sm:$0xf]
  %v69 = vld [vmem:[%s2 + $0x14] sm:$0xf]
  %v70 = vld [vmem:[%s2 + $0x18] sm:$0xf]
  %v71 = vld [vmem:[%s2 + $0x1c] sm:$0xf]
  %v72 = vld [vmem:[%s2 + $0x20] sm:$0xf]
  %v73 = vld [vmem:[%s2 + $0x24] sm:$0xf]
  %v74 = vld [vmem:[%s2 + $0x28] sm:$0xf]
  %v75 = vld [vmem:[%s2 + $0x2c] sm:$0xf]
  %v76 = vld [vmem:[%s2 + $0x30] sm:$0xf]
  %v77 = vld [vmem:[%s2 + $0x34] sm:$0xf]
  %v78 = vld [vmem:[%s2 + $0x38] sm:$0xf]
  %v79 = vld [vmem:[%s2 + $0x3c] sm:$0xf]
  %v80 = vld [vmem:[%s2 + $0x40] sm:$0xf]
  %v81 = vld [vmem:[%s2 + $0x44] sm:$0xf]
  %v82 = vld [vmem:[%s2 + $0x48] sm:$0xf]
  %v83 = vld [vmem:[%s2 + $0x4c] sm:$0xf]
  %v84 = vld [vmem:[%s2 + $0x50] sm:$0xf]
  %v85 = vld [vmem:[%s2 + $0x54] sm:$0xf]
  %v86 = vld [vmem:[%s2 + $0x58] sm:$0xf]
  %v87 = vld [vmem:[%s2 + $0x5c] sm:$0xf]
  %v88 = vld [vmem:[%s2 + $0x60] sm:$0xf]
  %v89 = vld [vmem:[%s2 + $0x64] sm:$0xf]
  %v90 = vld [vmem:[%s2 + $0x68] sm:$0xf]
  %v91 = vld [vmem:[%s2 + $0x6c] sm:$0xf]
  %v92 = vld [vmem:[%s2 + $0x70] sm:$0xf]
  %v93 = vld [vmem:[%s2 + $0x74] sm:$0xf]
  %v94 = vld [vmem:[%s2 + $0x78] sm:$0xf]
  %v95 = vld [vmem:[%s2 + $0x7c] sm:$0xf]
  %v96 = vld [vmem:[%s3] sm:$0x1]
  %v98 = vlaneseq
  %v99 = vshrl.u32 %v98, 7
  %v100 = vsub.s32 0, %v99
  %v101 = vrot.slane %v96, %v100
  %v135 = vunpack.c.l.b16 %v64
  %v136 = vunpack.c.l.b16 %v65
  %v137 = vunpack.c.l.b16 %v66
  %v138 = vunpack.c.l.b16 %v67
  %v139 = vunpack.c.l.b16 %v68
  %v140 = vunpack.c.l.b16 %v69
  %v141 = vunpack.c.l.b16 %v70
  %v142 = vunpack.c.l.b16 %v71
  %v143 = vunpack.c.l.b16 %v72
  %v144 = vunpack.c.l.b16 %v73
  %v145 = vunpack.c.l.b16 %v74
  %v146 = vunpack.c.l.b16 %v75
  %v147 = vunpack.c.l.b16 %v76
  %v148 = vunpack.c.l.b16 %v77
  %v149 = vunpack.c.l.b16 %v78
  %v150 = vunpack.c.l.b16 %v79
  %v151 = vunpack.c.l.b16 %v80
  %v152 = vunpack.c.l.b16 %v81
  %v153 = vunpack.c.l.b16 %v82
  %v154 = vunpack.c.l.b16 %v83
  %v155 = vunpack.c.l.b16 %v84
  %v156 = vunpack.c.l.b16 %v85
  %v157 = vunpack.c.l.b16 %v86
  %v158 = vunpack.c.l.b16 %v87
  %v159 = vunpack.c.l.b16 %v88
  %v160 = vunpack.c.l.b16 %v89
  %v161 = vunpack.c.l.b16 %v90
  %v162 = vunpack.c.l.b16 %v91
  %v163 = vunpack.c.l.b16 %v92
  %v164 = vunpack.c.l.b16 %v93
  %v165 = vunpack.c.l.b16 %v94
  %v166 = vunpack.c.l.b16 %v95
  %v167 = vpack.c.b16 %v136, %v135
  %v168 = vpack.c.b16 %v138, %v137
  %v169 = vpack.c.b16 %v140, %v139
  %v170 = vpack.c.b16 %v142, %v141
  %v171 = vpack.c.b16 %v144, %v143
  %v172 = vpack.c.b16 %v146, %v145
  %v173 = vpack.c.b16 %v148, %v147
  %v174 = vpack.c.b16 %v150, %v149
  %v175 = vpack.c.b16 %v152, %v151
  %v176 = vpack.c.b16 %v154, %v153
  %v177 = vpack.c.b16 %v156, %v155
  %v178 = vpack.c.b16 %v158, %v157
  %v179 = vpack.c.b16 %v160, %v159
  %v180 = vpack.c.b16 %v162, %v161
  %v181 = vpack.c.b16 %v164, %v163
  %v182 = vpack.c.b16 %v166, %v165
  %199 = vmatprep.subr.bf16.mxu0 0
  %200 = vmatpush1.bf16.msra.mxu0 %v167
  %201 = vmatprep.subr.bf16.mxu0 0
  %202 = vmatpush1.bf16.msra.mxu0 %v168
  %203 = vmatprep.subr.bf16.mxu0 0
  %204 = vmatpush1.bf16.msra.mxu0 %v169
  %205 = vmatprep.subr.bf16.mxu0 0
  %206 = vmatpush1.bf16.msra.mxu0 %v170
  %207 = vmatprep.subr.bf16.mxu0 0
  %208 = vmatpush1.bf16.msra.mxu0 %v171
  %209 = vmatprep.subr.bf16.mxu0 0
  %210 = vmatpush1.bf16.msra.mxu0 %v172
  %211 = vmatprep.subr.bf16.mxu0 0
  %212 = vmatpush1.bf16.msra.mxu0 %v173
  %213 = vmatprep.subr.bf16.mxu0 0
  %214 = vmatpush1.bf16.msra.mxu0 %v174
  %215 = vmatprep.subr.bf16.mxu0 0
  %216 = vmatpush1.bf16.msra.mxu0 %v175
  %217 = vmatprep.subr.bf16.mxu0 0
  %218 = vmatpush1.bf16.msra.mxu0 %v176
  %219 = vmatprep.subr.bf16.mxu0 0
  %220 = vmatpush1.bf16.msra.mxu0 %v177
  %221 = vmatprep.subr.bf16.mxu0 0
  %222 = vmatpush1.bf16.msra.mxu0 %v178
  %223 = vmatprep.subr.bf16.mxu0 0
  %224 = vmatpush1.bf16.msra.mxu0 %v179
  %225 = vmatprep.subr.bf16.mxu0 0
  %226 = vmatpush1.bf16.msra.mxu0 %v180
  %227 = vmatprep.subr.bf16.mxu0 0
  %228 = vmatpush1.bf16.msra.mxu0 %v181
  %229 = vmatprep.subr.bf16.mxu0 0
  %230 = vmatpush1.bf16.msra.mxu0 %v182
  %231 = vmatprep.mubr.bf16.mxu0 %v63
  %232 = vmatmul.mubr.bf16.gmra.mrb[0].mxu0 %v62
  %v233 = vpop.f32.mrb[0].mxu0
  %v234 = vadd.f32 %v101, %v233
  %v235 = vpop.f32.mrb[0].mxu0
  %v236 = vpop.f32.mrb[0].mxu0
  %v237 = vpop.f32.mrb[0].mxu0
  %238 = vdwg.mxu0
  %v239 = vmax.f32 %v234, 0.0
  %v240 = vpack.c.bf16 %v239, %v239
  %v241 = vld [vmem:[%s4] sm:$0xf]
  %v242 = vld [vmem:[%s4 + $0x4] sm:$0xf]
  %v243 = vld [vmem:[%s4 + $0x8] sm:$0xf]
  %v244 = vld [vmem:[%s4 + $0xc] sm:$0xf]
  %v245 = vld [vmem:[%s4 + $0x10] sm:$0xf]
  %v246 = vld [vmem:[%s4 + $0x14] sm:$0xf]
  %v247 = vld [vmem:[%s4 + $0x18] sm:$0xf]
  %v248 = vld [vmem:[%s4 + $0x1c] sm:$0xf]
  %v249 = vld [vmem:[%s5] sm:$0x1]
  %v251 = vlaneseq
  %v252 = vshrl.u32 %v251, 7
  %v253 = vsub.s32 0, %v252
  %v254 = vrot.slane %v249, %v253
  %v264 = vunpack.c.l.b16 %v241
  %v265 = vunpack.c.l.b16 %v242
  %v266 = vunpack.c.l.b16 %v243
  %v267 = vunpack.c.l.b16 %v244
  %v268 = vunpack.c.l.b16 %v245
  %v269 = vunpack.c.l.b16 %v246
  %v270 = vunpack.c.l.b16 %v247
  %v271 = vunpack.c.l.b16 %v248
  %v272 = vpack.c.b16 %v265, %v264
  %v273 = vpack.c.b16 %v267, %v266
  %v274 = vpack.c.b16 %v269, %v268
  %v275 = vpack.c.b16 %v271, %v270
  %vm280 = vcmask 523264
  %v282 = vsel %vm280, %v240, 0
  %284 = vmatprep.subr.bf16.mxu0 0
  %285 = vmatpush1.bf16.msra.mxu0 %v272
  %286 = vmatprep.subr.bf16.mxu0 0
  %287 = vmatpush1.bf16.msra.mxu0 %v273
  %288 = vmatprep.subr.bf16.mxu0 0
  %289 = vmatpush1.bf16.msra.mxu0 %v274
  %290 = vmatprep.subr.bf16.mxu0 0
  %291 = vmatpush1.bf16.msra.mxu0 %v275
  %292 = vmatprep.subr.bf16.mxu0 0
  %293 = vmatpush1.bf16.msra.mxu0 0
  %294 = vmatprep.subr.bf16.mxu0 0
  %295 = vmatpush1.bf16.msra.mxu0 0
  %296 = vmatprep.subr.bf16.mxu0 0
  %297 = vmatpush1.bf16.msra.mxu0 0
  %298 = vmatprep.subr.bf16.mxu0 0
  %299 = vmatpush1.bf16.msra.mxu0 0
  %300 = vmatprep.subr.bf16.mxu0 0
  %301 = vmatpush1.bf16.msra.mxu0 0
  %302 = vmatprep.subr.bf16.mxu0 0
  %303 = vmatpush1.bf16.msra.mxu0 0
  %304 = vmatprep.subr.bf16.mxu0 0
  %305 = vmatpush1.bf16.msra.mxu0 0
  %306 = vmatprep.subr.bf16.mxu0 0
  %307 = vmatpush1.bf16.msra.mxu0 0
  %308 = vmatprep.subr.bf16.mxu0 0
  %309 = vmatpush1.bf16.msra.mxu0 0
  %310 = vmatprep.subr.bf16.mxu0 0
  %311 = vmatpush1.bf16.msra.mxu0 0
  %312 = vmatprep.subr.bf16.mxu0 0
  %313 = vmatpush1.bf16.msra.mxu0 0
  %314 = vmatprep.subr.bf16.mxu0 0
  %315 = vmatpush1.bf16.msra.mxu0 0
  %316 = vmatprep.mubr.bf16.mxu0 0
  %317 = vmatmul.mubr.bf16.gmra.mrb[0].mxu0 %v282
  %v318 = vpop.f32.mrb[0].mxu0
  %v319 = vadd.f32 %v254, %v318
  %v320 = vpop.f32.mrb[0].mxu0
  %v321 = vpop.f32.mrb[0].mxu0
  %v322 = vpop.f32.mrb[0].mxu0
  %323 = vdwg.mxu0
  %v324 = vmax.f32 %v319, 0.0
  %v325 = vpack.c.bf16 %v324, %v324
  %v326 = vld [vmem:[%s6] sm:$0xf]
  %v327 = vld [vmem:[%s6 + $0x4] sm:$0xf]
  %v328 = vld [vmem:[%s7] sm:$0x1]
  %v330 = vlaneseq
  %v331 = vshrl.u32 %v330, 7
  %v332 = vsub.s32 0, %v331
  %v333 = vrot.slane %v328, %v332
  %v337 = vunpack.c.l.b16 %v326
  %v338 = vunpack.c.l.b16 %v327
  %v339 = vpack.c.b16 %v338, %v337
  %vm341 = vcmask 130048
  %v343 = vsel %vm341, %v325, 0
  %345 = vmatprep.subr.bf16.mxu0 0
  %346 = vmatpush1.bf16.msra.mxu0 %v339
  %347 = vmatprep.subr.bf16.mxu0 0
  %348 = vmatpush1.bf16.msra.mxu0 0
  %349 = vmatprep.subr.bf16.mxu0 0
  %350 = vmatpush1.bf16.msra.mxu0 0
  %351 = vmatprep.subr.bf16.mxu0 0
  %352 = vmatpush1.bf16.msra.mxu0 0
  %353 = vmatprep.subr.bf16.mxu0 0
  %354 = vmatpush1.bf16.msra.mxu0 0
  %355 = vmatprep.subr.bf16.mxu0 0
  %356 = vmatpush1.bf16.msra.mxu0 0
  %357 = vmatprep.subr.bf16.mxu0 0
  %358 = vmatpush1.bf16.msra.mxu0 0
  %359 = vmatprep.subr.bf16.mxu0 0
  %360 = vmatpush1.bf16.msra.mxu0 0
  %361 = vmatprep.subr.bf16.mxu0 0
  %362 = vmatpush1.bf16.msra.mxu0 0
  %363 = vmatprep.subr.bf16.mxu0 0
  %364 = vmatpush1.bf16.msra.mxu0 0
  %365 = vmatprep.subr.bf16.mxu0 0
  %366 = vmatpush1.bf16.msra.mxu0 0
  %367 = vmatprep.subr.bf16.mxu0 0
  %368 = vmatpush1.bf16.msra.mxu0 0
  %369 = vmatprep.subr.bf16.mxu0 0
  %370 = vmatpush1.bf16.msra.mxu0 0
  %371 = vmatprep.subr.bf16.mxu0 0
  %372 = vmatpush1.bf16.msra.mxu0 0
  %373 = vmatprep.subr.bf16.mxu0 0
  %374 = vmatpush1.bf16.msra.mxu0 0
  %375 = vmatprep.subr.bf16.mxu0 0
  %376 = vmatpush1.bf16.msra.mxu0 0
  %377 = vmatprep.mubr.bf16.mxu0 0
  %378 = vmatmul.mubr.bf16.gmra.mrb[0].mxu0 %v343
  %v379 = vpop.f32.mrb[0].mxu0
  %v380 = vadd.f32 %v333, %v379
  %v381 = vpop.f32.mrb[0].mxu0
  %v382 = vpop.f32.mrb[0].mxu0
  %v383 = vpop.f32.mrb[0].mxu0
  %384 = vdwg.mxu0
  %vm385 = vcmask 123904
  %386 = vst.msk [vmem:[%s14] sm:$0x3] %vm385, %v380
  %v387 = vmul.f32 %v380, 0.5
  %v388 = vmul.f32 %v387, 1.442695
  %v389 = vpow.pop %v388
  %v390 = vld [vmem:[%s1] sm:$0x3]
  %392 = vrot.lane.b32.xlu0 %v389, 120
  %v393 = vpop.permute.xlu0 %392
  %v395 = vmul.f32 %v390, %v393
  %v396 = vadd.f32 %v395, %v380
  %v397 = vpack.c.bf16 %v396, %v396
  %v398 = vld [vmem:[%s8] sm:$0xf]
  %v399 = vld [vmem:[%s9] sm:$0x1]
  %v401 = vlaneseq
  %v402 = vshrl.u32 %v401, 7
  %v403 = vsub.s32 0, %v402
  %v404 = vrot.slane %v399, %v403
  %vm406 = vcmask 64512
  %v408 = vsel %vm406, %v397, 0
  %vm410 = vcmask 1043456
  %v412 = vsel %vm410, %v398, 0
  %414 = vmatprep.subr.bf16.mxu0 0
  %415 = vmatpush1.bf16.msra.mxu0 %v412
  %416 = vmatprep.subr.bf16.mxu0 0
  %417 = vmatpush1.bf16.msra.mxu0 0
  %418 = vmatprep.subr.bf16.mxu0 0
  %419 = vmatpush1.bf16.msra.mxu0 0
  %420 = vmatprep.subr.bf16.mxu0 0
  %421 = vmatpush1.bf16.msra.mxu0 0
  %422 = vmatprep.subr.bf16.mxu0 0
  %423 = vmatpush1.bf16.msra.mxu0 0
  %424 = vmatprep.subr.bf16.mxu0 0
  %425 = vmatpush1.bf16.msra.mxu0 0
  %426 = vmatprep.subr.bf16.mxu0 0
  %427 = vmatpush1.bf16.msra.mxu0 0
  %428 = vmatprep.subr.bf16.mxu0 0
  %429 = vmatpush1.bf16.msra.mxu0 0
  %430 = vmatprep.subr.bf16.mxu0 0
  %431 = vmatpush1.bf16.msra.mxu0 0
  %432 = vmatprep.subr.bf16.mxu0 0
  %433 = vmatpush1.bf16.msra.mxu0 0
  %434 = vmatprep.subr.bf16.mxu0 0
  %435 = vmatpush1.bf16.msra.mxu0 0
  %436 = vmatprep.subr.bf16.mxu0 0
  %437 = vmatpush1.bf16.msra.mxu0 0
  %438 = vmatprep.subr.bf16.mxu0 0
  %439 = vmatpush1.bf16.msra.mxu0 0
  %440 = vmatprep.subr.bf16.mxu0 0
  %441 = vmatpush1.bf16.msra.mxu0 0
  %442 = vmatprep.subr.bf16.mxu0 0
  %443 = vmatpush1.bf16.msra.mxu0 0
  %444 = vmatprep.subr.bf16.mxu0 0
  %445 = vmatpush1.bf16.msra.mxu0 0
  %446 = vmatprep.mubr.bf16.mxu0 0
  %447 = vmatmul.mubr.bf16.gmra.mrb[0].mxu0 %v408
  %v448 = vpop.f32.mrb[0].mxu0
  %v449 = vadd.f32 %v404, %v448
  %v450 = vpop.f32.mrb[0].mxu0
  %v451 = vpop.f32.mrb[0].mxu0
  %v452 = vpop.f32.mrb[0].mxu0
  %453 = vdwg.mxu0
  %v454 = vmax.f32 %v449, 0.0
  %v455 = vpack.c.bf16 %v454, %v454
  %v456 = vld [vmem:[%s10] sm:$0xf]
  %v457 = vld [vmem:[%s10 + $0x4] sm:$0xf]
  %v458 = vld [vmem:[%s11] sm:$0x1]
  %v460 = vlaneseq
  %v461 = vshrl.u32 %v460, 7
  %v462 = vsub.s32 0, %v461
  %v463 = vrot.slane %v458, %v462
  %v467 = vunpack.c.l.b16 %v456
  %v468 = vunpack.c.l.b16 %v457
  %v469 = vpack.c.b16 %v468, %v467
  %v472 = vsel %vm341, %v455, 0
  %474 = vmatprep.subr.bf16.mxu0 0
  %475 = vmatpush1.bf16.msra.mxu0 %v469
  %476 = vmatprep.subr.bf16.mxu0 0
  %477 = vmatpush1.bf16.msra.mxu0 0
  %478 = vmatprep.subr.bf16.mxu0 0
  %479 = vmatpush1.bf16.msra.mxu0 0
  %480 = vmatprep.subr.bf16.mxu0 0
  %481 = vmatpush1.bf16.msra.mxu0 0
  %482 = vmatprep.subr.bf16.mxu0 0
  %483 = vmatpush1.bf16.msra.mxu0 0
  %484 = vmatprep.subr.bf16.mxu0 0
  %485 = vmatpush1.bf16.msra.mxu0 0
  %486 = vmatprep.subr.bf16.mxu0 0
  %487 = vmatpush1.bf16.msra.mxu0 0
  %488 = vmatprep.subr.bf16.mxu0 0
  %489 = vmatpush1.bf16.msra.mxu0 0
  %490 = vmatprep.subr.bf16.mxu0 0
  %491 = vmatpush1.bf16.msra.mxu0 0
  %492 = vmatprep.subr.bf16.mxu0 0
  %493 = vmatpush1.bf16.msra.mxu0 0
  %494 = vmatprep.subr.bf16.mxu0 0
  %495 = vmatpush1.bf16.msra.mxu0 0
  %496 = vmatprep.subr.bf16.mxu0 0
  %497 = vmatpush1.bf16.msra.mxu0 0
  %498 = vmatprep.subr.bf16.mxu0 0
  %499 = vmatpush1.bf16.msra.mxu0 0
  %500 = vmatprep.subr.bf16.mxu0 0
  %501 = vmatpush1.bf16.msra.mxu0 0
  %502 = vmatprep.subr.bf16.mxu0 0
  %503 = vmatpush1.bf16.msra.mxu0 0
  %504 = vmatprep.subr.bf16.mxu0 0
  %505 = vmatpush1.bf16.msra.mxu0 0
  %506 = vmatprep.mubr.bf16.mxu0 0
  %507 = vmatmul.mubr.bf16.gmra.mrb[0].mxu0 %v472
  %v508 = vpop.f32.mrb[0].mxu0
  %v509 = vadd.f32 %v463, %v508
  %v510 = vpop.f32.mrb[0].mxu0
  %v511 = vpop.f32.mrb[0].mxu0
  %v512 = vpop.f32.mrb[0].mxu0
  %513 = vdwg.mxu0
  %v514 = vmax.f32 %v509, 0.0
  %v515 = vpack.c.bf16 %v514, %v514
  %v516 = vld [vmem:[%s12] sm:$0xff]
  %v517 = vld [vmem:[%s12 + $0x8] sm:$0xff]
  %v518 = vld [vmem:[%s12 + $0x10] sm:$0xff]
  %v519 = vld [vmem:[%s12 + $0x18] sm:$0xff]
  %v520 = vld [vmem:[%s12 + $0x20] sm:$0xff]
  %v521 = vld [vmem:[%s12 + $0x28] sm:$0xff]
  %v522 = vld [vmem:[%s12 + $0x30] sm:$0xff]
  %v523 = vld [vmem:[%s12 + $0x38] sm:$0xff]
  %v524 = vld [vmem:[%s13] sm:$0x3]
  %v526 = vlaneseq
  %v527 = vshrl.u32 %v526, 7
  %v528 = vsub.s32 0, %v527
  %v529 = vrot.slane %v524, %v528
  %v530 = vlaneseq
  %v531 = vshrl.u32 %v530, 7
  %v532 = vsub.s32 1, %v531
  %v533 = vrot.slane %v524, %v532
  %v544 = vunpack.c.l.b16 %v516
  %v545 = vunpack.c.h.b16 %v516
  %v546 = vunpack.c.l.b16 %v517
  %v547 = vunpack.c.h.b16 %v517
  %v548 = vunpack.c.l.b16 %v518
  %v549 = vunpack.c.h.b16 %v518
  %v550 = vunpack.c.l.b16 %v519
  %v551 = vunpack.c.h.b16 %v519
  %v552 = vunpack.c.l.b16 %v520
  %v553 = vunpack.c.h.b16 %v520
  %v554 = vunpack.c.l.b16 %v521
  %v555 = vunpack.c.h.b16 %v521
  %v556 = vunpack.c.l.b16 %v522
  %v557 = vunpack.c.h.b16 %v522
  %v558 = vunpack.c.l.b16 %v523
  %v559 = vunpack.c.h.b16 %v523
  %v560 = vpack.c.b16 %v546, %v544
  %v561 = vpack.c.b16 %v547, %v545
  %v562 = vpack.c.b16 %v550, %v548
  %v563 = vpack.c.b16 %v551, %v549
  %v564 = vpack.c.b16 %v554, %v552
  %v565 = vpack.c.b16 %v555, %v553
  %v566 = vpack.c.b16 %v558, %v556
  %v567 = vpack.c.b16 %v559, %v557
  %v577 = vsel %vm280, %v515, 0
  %579 = vmatprep.subr.bf16.mxu0 %v561
  %580 = vmatpush1.bf16.msra.mxu0 %v560
  %581 = vmatprep.subr.bf16.mxu0 %v563
  %582 = vmatpush1.bf16.msra.mxu0 %v562
  %583 = vmatprep.subr.bf16.mxu0 %v565
  %584 = vmatpush1.bf16.msra.mxu0 %v564
  %585 = vmatprep.subr.bf16.mxu0 %v567
  %586 = vmatpush1.bf16.msra.mxu0 %v566
  %587 = vmatprep.subr.bf16.mxu0 0
  %588 = vmatpush1.bf16.msra.mxu0 0
  %589 = vmatprep.subr.bf16.mxu0 0
  %590 = vmatpush1.bf16.msra.mxu0 0
  %591 = vmatprep.subr.bf16.mxu0 0
  %592 = vmatpush1.bf16.msra.mxu0 0
  %593 = vmatprep.subr.bf16.mxu0 0
  %594 = vmatpush1.bf16.msra.mxu0 0
  %595 = vmatprep.subr.bf16.mxu0 0
  %596 = vmatpush1.bf16.msra.mxu0 0
  %597 = vmatprep.subr.bf16.mxu0 0
  %598 = vmatpush1.bf16.msra.mxu0 0
  %599 = vmatprep.subr.bf16.mxu0 0
  %600 = vmatpush1.bf16.msra.mxu0 0
  %601 = vmatprep.subr.bf16.mxu0 0
  %602 = vmatpush1.bf16.msra.mxu0 0
  %603 = vmatprep.subr.bf16.mxu0 0
  %604 = vmatpush1.bf16.msra.mxu0 0
  %605 = vmatprep.subr.bf16.mxu0 0
  %606 = vmatpush1.bf16.msra.mxu0 0
  %607 = vmatprep.subr.bf16.mxu0 0
  %608 = vmatpush1.bf16.msra.mxu0 0
  %609 = vmatprep.subr.bf16.mxu0 0
  %610 = vmatpush1.bf16.msra.mxu0 0
  %611 = vmatprep.mubr.bf16.mxu0 0
  %612 = vmatmul.mubr.bf16.gmra.mrb[0].mxu0 %v577
  %v613 = vpop.f32.mrb[0].mxu0
  %v614 = vadd.f32 %v529, %v613
  %v615 = vpop.f32.mrb[0].mxu0
  %v616 = vadd.f32 %v533, %v615
  %v617 = vpop.f32.mrb[0].mxu0
  %v618 = vpop.f32.mrb[0].mxu0
  %619 = vdwg.mxu0
  %v620 = vxor.u32 %v614, 2147483648
  %v621 = vxor.u32 %v616, 2147483648
  %v622 = vmul.f32 %v620, 1.442695
  %v623 = vpow.pop %v622
  %v624 = vmul.f32 %v621, 1.442695
  %v625 = vpow.pop %v624
  %v626 = vadd.f32 %v623, 1.0
  %v627 = vadd.f32 %v625, 1.0
  %v628 = vrcp.pop %v626
  %v629 = vmul.f32 1.0, %v628
  %v630 = vrcp.pop %v627
  %v631 = vmul.f32 1.0, %v630
  %v632 = vpack.c.bf16 %v629, %v629
  %v633 = vpack.c.bf16 %v631, %v631
  %v636 = vcombine.low %v632, %v633
  %v638 = vunpack.c.l.s4 1966171168
  %v639 = vunpack.c.0.s8 %v638
  %v640 = vlaneseq
  %v641 = vshrl.u32 %v640, 7
  %v642 = vsub.s32 %v639, %v641
  %v643 = vrot.slane %v636, %v642
  %v645 = vunpack.c.l.s4 1966171168
  %v646 = vunpack.c.0.s8 %v645
  %v647 = vlaneseq
  %v648 = vshrl.u32 %v647, 7
  %v649 = vsub.s32 %v646, %v648
  %v650 = vrot.slane %v643, %v649
  %652 = vst [vmem:[%s15] sm:$0x3] %v650
  // Predicated region
  $region58: #{vae_forward.1} parent=0 // pred_check
    _
  $region59: #{vae_forward.1} parent=0 // pred_check_branch
    %654 = sbr.rel (0) target = $region61
  $region60: #{vae_forward.1} parent=0 // pred_region
    _
  $region61: #{vae_forward.1} parent=0 // pred_fallthru
    _
  // Predicated region
  $region62: #{vae_forward.1} parent=0 // pred_check
    _
  $region63: #{vae_forward.1} parent=0 // pred_check_branch
    %656 = sbr.rel (0) target = $region65
  $region64: #{vae_forward.1} parent=0 // pred_region
    _
  $region65: #{vae_forward.1} parent=0 // pred_fallthru
    _
  // Predicated region
  $region66: #{vae_forward.1} parent=0 // pred_check
    _
  $region67: #{vae_forward.1} parent=0 // pred_check_branch
    %658 = sbr.rel (0) target = $region69
  $region68: #{vae_forward.1} parent=0 // pred_region
    _
  $region69: #{vae_forward.1} parent=0 // pred_fallthru
    _
  // Predicated region
  $region70: #{vae_forward.1} parent=0 // pred_check
    _
  $region71: #{vae_forward.1} parent=0 // pred_check_branch
    %660 = sbr.rel (0) target = $region73
  $region72: #{vae_forward.1} parent=0 // pred_region
    _
  $region73: #{vae_forward.1} parent=0 // pred_fallthru
    _

</llo_original>
